<compile_context>
chip_gen: v5e
topology: v5e:2x2
jax: 0.10.0
libtpu: 0.0.40
codegen_flags: <defaults>
</compile_context>

<pallas_src>
import jax
import jax.numpy as jnp
from jax.experimental import pallas as pl
from jax.experimental.pallas import tpu as pltpu


def highway_kernel(x_ref, wh_ref, bh_ref, wt_ref, bt_ref, o_ref):
    x = x_ref[...]                                            # (tb, D) f32

    # H branch: Linear(D -> D) + ReLU on the MXU, bf16 operands, f32 accumulate.
    h = jnp.dot(x.astype(jnp.bfloat16), wh_ref[...],
                preferred_element_type=jnp.float32) + bh_ref[...]
    h = jnp.maximum(h, 0.0)                                   # (tb, D) f32

    # T gate: Linear(D -> 1) + sigmoid done on the VPU/XLU (row-sum),
    # avoiding an N=1 MXU matmul and a lane-padded (D,1) weight tile.
    t_logit = jnp.sum(x * wt_ref[...], axis=-1, keepdims=True) + bt_ref[0]
    t = jax.nn.sigmoid(t_logit)                               # (tb, 1), broadcasts over lanes

    # y = t*h + (1-t)*x  ==  x + t*(h - x)   (saves a multiply + broadcast)
    o_ref[...] = (x + t * (h - x)).astype(o_ref.dtype)


def _round_up(a, m):
    return ((a + m - 1) // m) * m


def highway_net(x, w_h, b_h, w_t, b_t, *, tb=256):
    """x: (B, D) float32.
       w_h: (D, D) in->out layout.  b_h: (D,).
       w_t: (D,) or (D, 1) in->out layout.  b_t: scalar or (1,)."""
    B, D = x.shape

    # Weight preprocessing at the pallas_call boundary.
    wh_bf16 = w_h.astype(jnp.bfloat16)                    # (D, D) bf16 MXU operand
    bh_row = b_h.reshape(1, D).astype(jnp.float32)        # (1, D)
    wt_row = jnp.asarray(w_t, jnp.float32).reshape(1, D)  # (1, D) gate weight row
    bt_sc = jnp.asarray(b_t, jnp.float32).reshape(1)      # (1,) scalar -> SMEM

    # Pick a batch tile: multiple of 8 sublanes, no larger than the padded batch.
    tb = min(tb, _round_up(B, 8))
    Bp = _round_up(B, tb)
    x_in = jnp.pad(x, ((0, Bp - B), (0, 0))) if Bp != B else x

    out = pl.pallas_call(
        highway_kernel,
        out_shape=jax.ShapeDtypeStruct((Bp, D), x.dtype),
        grid_spec=pltpu.PrefetchScalarGridSpec(
            num_scalar_prefetch=0,
            grid=(Bp // tb,),
            in_specs=[
                # x tile: streamed (double-buffered by default).
                pl.BlockSpec((tb, D), lambda i: (i, 0)),
                # Resident weights/biases: constant index_map -> single buffer.
                pl.BlockSpec((D, D), lambda i: (0, 0),
                             pipeline_mode=pl.Buffered(1)),      # W_H (bf16)
                pl.BlockSpec((1, D), lambda i: (0, 0),
                             pipeline_mode=pl.Buffered(1)),      # b_H
                pl.BlockSpec((1, D), lambda i: (0, 0),
                             pipeline_mode=pl.Buffered(1)),      # w_T row
                # b_T is a lone scalar: keep it in SMEM.
                pl.BlockSpec(memory_space=pltpu.MemorySpace.SMEM),
            ],
            out_specs=pl.BlockSpec((tb, D), lambda i: (i, 0)),
        ),
        compiler_params=pltpu.CompilerParams(
            dimension_semantics=("parallel",)),
    )(x_in, wh_bf16, bh_row, wt_row, bt_sc)

    return out[:B]


def highway_ref(x, w_h, b_h, w_t, b_t):
    t = jax.nn.sigmoid(x @ w_t.reshape(-1, 1) + b_t)
    h = jnp.maximum(x @ w_h + b_h, 0.0)
    return t * h + (1.0 - t) * x


if __name__ == "__main__":
    key = jax.random.PRNGKey(0)
    # Ragged batch (not a multiple of the tile) exercises the padding path;
    # with tb=256 this gives a 2-step parallel grid (both v7x TCs busy).
    B, D = 500, 128  # batch, input_size

    k_x, k_wh, k_bh, k_wt, k_bt = jax.random.split(key, 5)
    x = jax.random.normal(k_x, (B, D), dtype=jnp.float32)
    # Deterministic "PyTorch-like" uniform(-1/sqrt(D), 1/sqrt(D)) init.
    bound = 1.0 / jnp.sqrt(jnp.float32(D))
    w_h = jax.random.uniform(k_wh, (D, D), jnp.float32, -bound, bound)  # (in, out)
    b_h = jax.random.uniform(k_bh, (D,), jnp.float32, -bound, bound)
    w_t = jax.random.uniform(k_wt, (D,), jnp.float32, -bound, bound)    # gate weight (in,)
    b_t = jax.random.uniform(k_bt, (1,), jnp.float32, -bound, bound)

    out = highway_net(x, w_h, b_h, w_t, b_t)
    out = jax.block_until_ready(out)

    ref = highway_ref(x, w_h, b_h, w_t, b_t)
    assert out.shape == (B, D)
    # Tolerance relaxed vs. the pure-f32 version because W_H / x enter the MXU
    # in bfloat16 (f32 accumulation).
    assert jnp.allclose(out, ref, atol=2e-2, rtol=2e-2), float(
        jnp.max(jnp.abs(out - ref)))

    print("KERNEL_OK")
</pallas_src>

<mosaic_0001>
module attributes {stable_mosaic.version = 11 : i64} {
  func.func @highway_kernel(%arg0: i32, %arg1: memref<256x128xf32, #tpu.memory_space<vmem>>, %arg2: memref<128x128xbf16, #tpu.memory_space<vmem>>, %arg3: memref<1x128xf32, #tpu.memory_space<vmem>>, %arg4: memref<1x128xf32, #tpu.memory_space<vmem>>, %arg5: memref<1xf32, #tpu.memory_space<smem>>, %arg6: memref<256x128xf32, #tpu.memory_space<vmem>>) attributes {dimension_semantics = [#tpu.dimension_semantics<parallel>], iteration_bounds = array<i64: 2>, scalar_prefetch = 0 : i64, scratch_operands = 0 : i64, tpu.core_type = #tpu.core_type<tc>, window_params = [{transform_indices = @transform_0, window_bounds = array<i64: 256, 128>}, {pipeline_mode = #tpu.pipeline_mode<synchronous>, transform_indices = @transform_1, window_bounds = array<i64: 128, 128>}, {pipeline_mode = #tpu.pipeline_mode<synchronous>, transform_indices = @transform_2, window_bounds = array<i64: 1, 128>}, {pipeline_mode = #tpu.pipeline_mode<synchronous>, transform_indices = @transform_3, window_bounds = array<i64: 1, 128>}, {transform_indices = @transform_4, window_bounds = array<i64: 1>}, {transform_indices = @transform_5, window_bounds = array<i64: 256, 128>}]} {
    %c0 = arith.constant 0 : index
    %c0_0 = arith.constant 0 : index
    %0 = vector.load %arg1[%c0, %c0_0] : memref<256x128xf32, #tpu.memory_space<vmem>>, vector<256x128xf32>
    %1 = arith.truncf %0 : vector<256x128xf32> to vector<256x128xbf16>
    %c0_1 = arith.constant 0 : index
    %c0_2 = arith.constant 0 : index
    %2 = vector.load %arg2[%c0_1, %c0_2] : memref<128x128xbf16, #tpu.memory_space<vmem>>, vector<128x128xbf16>
    %cst = arith.constant dense<0.000000e+00> : vector<256x128xf32>
    %3 = tpu.matmul %1, %2, %cst {dimension_numbers = #tpu.dot_dimension_numbers<[1], [0], [0], [1], [0, 0, 1, 1], [], []>} : vector<256x128xbf16>, vector<128x128xbf16>, vector<256x128xf32> -> vector<256x128xf32>
    %c0_3 = arith.constant 0 : index
    %c0_4 = arith.constant 0 : index
    %4 = vector.load %arg3[%c0_3, %c0_4] : memref<1x128xf32, #tpu.memory_space<vmem>>, vector<1x128xf32>
    %5 = vector.broadcast %4 : vector<1x128xf32> to vector<256x128xf32>
    %6 = arith.addf %3, %5 : vector<256x128xf32>
    %cst_5 = arith.constant 0.000000e+00 : f32
    %7 = vector.broadcast %cst_5 : f32 to vector<256x128xf32>
    %8 = arith.maximumf %6, %7 : vector<256x128xf32>
    %c0_6 = arith.constant 0 : index
    %c0_7 = arith.constant 0 : index
    %9 = vector.load %arg4[%c0_6, %c0_7] : memref<1x128xf32, #tpu.memory_space<vmem>>, vector<1x128xf32>
    %10 = vector.broadcast %9 : vector<1x128xf32> to vector<256x128xf32>
    %11 = arith.mulf %0, %10 : vector<256x128xf32>
    %cst_8 = arith.constant dense<0.000000e+00> : vector<256xf32>
    %12 = vector.multi_reduction <add>, %11, %cst_8 [1] : vector<256x128xf32> to vector<256xf32>
    %13 = vector.shape_cast %12 : vector<256xf32> to vector<256x1xf32>
    %c0_9 = arith.constant 0 : index
    %14 = memref.load %arg5[%c0_9] : memref<1xf32, #tpu.memory_space<smem>>
    %15 = vector.broadcast %14 : f32 to vector<256x1xf32>
    %16 = arith.addf %13, %15 : vector<256x1xf32>
    %17 = arith.negf %16 : vector<256x1xf32>
    %18 = math.exp %17 : vector<256x1xf32>
    %cst_10 = arith.constant 1.000000e+00 : f32
    %19 = vector.broadcast %cst_10 : f32 to vector<256x1xf32>
    %20 = arith.addf %19, %18 : vector<256x1xf32>
    %21 = arith.divf %19, %20 : vector<256x1xf32>
    %22 = arith.subf %8, %0 : vector<256x128xf32>
    %23 = vector.broadcast %21 : vector<256x1xf32> to vector<256x128xf32>
    %24 = arith.mulf %23, %22 : vector<256x128xf32>
    %25 = arith.addf %0, %24 : vector<256x128xf32>
    %c0_11 = arith.constant 0 : index
    %c0_12 = arith.constant 0 : index
    %26 = vector.load %arg6[%c0_11, %c0_12] : memref<256x128xf32, #tpu.memory_space<vmem>>, vector<256x128xf32>
    tpu.vector_store %arg6[%c0_11, %c0_12], %25 {strides = array<i32>} : memref<256x128xf32, #tpu.memory_space<vmem>>, vector<256x128xf32>,
    return
  }
  func.func @transform_0(%arg0: i32) -> (i32, i32) {
    %c0_i32 = arith.constant 0 : i32
    %c0_i32_0 = arith.constant 0 : i32
    return %arg0, %c0_i32 : i32, i32
  }
  func.func @transform_1(%arg0: i32) -> (i32, i32) {
    %c0_i32 = arith.constant 0 : i32
    %c0_i32_0 = arith.constant 0 : i32
    %c0_i32_1 = arith.constant 0 : i32
    return %c0_i32, %c0_i32_0 : i32, i32
  }
  func.func @transform_2(%arg0: i32) -> (i32, i32) {
    %c0_i32 = arith.constant 0 : i32
    %c0_i32_0 = arith.constant 0 : i32
    %c0_i32_1 = arith.constant 0 : i32
    return %c0_i32, %c0_i32_0 : i32, i32
  }
  func.func @transform_3(%arg0: i32) -> (i32, i32) {
    %c0_i32 = arith.constant 0 : i32
    %c0_i32_0 = arith.constant 0 : i32
    %c0_i32_1 = arith.constant 0 : i32
    return %c0_i32, %c0_i32_0 : i32, i32
  }
  func.func @transform_4(%arg0: i32) -> i32 {
    %c0_i32 = arith.constant 0 : i32
    %c0_i32_0 = arith.constant 0 : i32
    return %c0_i32 : i32
  }
  func.func @transform_5(%arg0: i32) -> (i32, i32) {
    %c0_i32 = arith.constant 0 : i32
    %c0_i32_0 = arith.constant 0 : i32
    return %arg0, %c0_i32 : i32, i32
  }
}

</mosaic_0001>

<llo_original>
// kernel: tpu_custom_call.1
$region0: #{tpu_custom_call.1}
  #allocation0 [shape = 'u32[]', space=smem, size = 0x4, offset = 0x4, fixed_abs, tag = 'smem constant byte address 0x4 - core index']
  #allocation1 [shape = 'u32[72,128]{1,0:T(1,128)}', space=vmem, size = 0x9000, scoped, tag = 'internal scratch']
  #allocation2 [shape = 'f32[1]{0:T(128)S(6)}', space=smem, size = 0x200, scoped, tag = 'scoped memory for tpu_custom_call.1']
  %s0 = inlined_call_operand.hbm [shape: f32[512,128], index: 0, kind: input, shape index: {}]
  %s1 = inlined_call_operand.hbm [shape: bf16[128,128], index: 1, kind: input, shape index: {}]
  %s2 = inlined_call_operand.vmem [shape: f32[1,128], index: 2, kind: input, shape index: {}]
  %s3 = inlined_call_operand.vmem [shape: f32[1,128], index: 3, kind: input, shape index: {}]
  %s4 = inlined_call_operand.<no memory space> [shape: f32[1], index: 4, kind: input, shape index: {}]
  %s5 = inlined_call_operand.hbm [shape: f32[512,128], index: 5, kind: output, shape index: {}]
  %s6 = sld [smem:[#allocation0]]
  $region61: #{tpu_custom_call.1} parent=0
    _
  %s8 = ssub.s32 1, %s6
  %s9 = scalar_select 0, %s8, %s6
  %10 = sst [smem:[#allocation2]] %s4
  $region1: #{tpu_custom_call.1} parent=0
    #allocation3 [shape = 'u8[262144]{0}', space=vmem, size = 0x40000, scoped, tag = 'input window, operand 0']
    #allocation4 [shape = 's32[2]{0}', space=sflag, size = 0x8, scoped, tag = 'scoped memory for tpu_custom_call.1']
    #allocation5 [shape = 's32[2]{0}', space=sflag, size = 0x8, scoped, tag = 'scoped memory for tpu_custom_call.1']
    #allocation6 [shape = 'u8[32768]{0}', space=vmem, size = 0x8000, scoped, tag = 'input window, operand 1, single buffered']
    #allocation7 [shape = 's32[1]{0}', space=sflag, size = 0x4, scoped, tag = 'scoped memory for tpu_custom_call.1']
    #allocation8 [shape = 'u8[262144]{0}', space=vmem, size = 0x40000, scoped, tag = 'output window, operand 0']
    %11 = vsyncpa [#allocation4], 0
    %s12 = scalar_lea.sflag [#allocation4], 1
    %13 = vsyncpa %s12, 0
    %14 = vsyncpa [#allocation7], 0
    %15 = vsyncpa [#allocation5], 0
    %s16 = scalar_lea.sflag [#allocation5], 1
    %17 = vsyncpa %s16, 0
    loop: start=0, step=1, limit=4
    $region2: #{tpu_custom_call.1} parent=1 // loop_pre_header
      _
    $region3: #{tpu_custom_call.1} parent=1 // loop_header
      %s19 = sphi 0, %s23
      %p20 = scmp.ge.s32.totalorder %s19, 4
      %s29 = sphi 0, %s31
      %s32 = sphi 0, %s29
      %s33 = sphi 0, %s32
      %s49 = sphi 0, %s33
      %s53 = sphi 0, %s53
      %s55 = sphi 0, %s53
      %s56 = sphi 0, %s55
      %s70 = sphi 0, %s56
      %s74 = sphi 0, %s74
      %s76 = sphi 0, %s74
      %s77 = sphi 0, %s76
      %s91 = sphi 0, %s77
      %s95 = sphi 0, %s95
      %s97 = sphi 0, %s95
      %s98 = sphi 0, %s97
      %s112 = sphi 0, %s98
      %s116 = sphi 0, %s116
      %s118 = sphi 0, %s116
      %s119 = sphi 0, %s118
      %s133 = sphi 0, %s119
      %s139 = sphi 0, %s141
      %s142 = sphi 0, %s139
      %s143 = sphi 0, %s142
      %s159 = sphi 0, %s143
    $region4: #{tpu_custom_call.1} parent=1 // loop_header_branch
      %22 = sbr.rel (%p20) target = $region8
    $region5: #{tpu_custom_call.1} parent=1 // loop_body
      %s24 = ssub.s32 %s19, 1
      %s25 = ssub.s32 %s19, 2
      %s26 = sadd.s32 %s19, 1
      %s27 = ssub.s32 %s19, %s26
      %p28 = scmp.eq.s32.totalorder %s27, 0
      %s30 = sadd.s32 %s29, 1
      %s31 = scalar_select %p28, %s29, %s30
      %p34 = pneg %p28
      %p35 = scmp.eq.s32.totalorder %s19, 1
      %p36 = por %p34, %p35
      %p37 = scmp.ne.s32.totalorder %s29, %s32
      %p38 = scmp.eq.s32.totalorder %s19, 0
      %p39 = por %p37, %p38
      %p40 = scmp.ne.s32.totalorder %s29, %s32
      %p41 = scmp.eq.s32.totalorder %s24, 1
      %p42 = por %p40, %p41
      %p43 = scmp.ne.s32.totalorder %s32, %s33
      %p44 = scmp.eq.s32.totalorder %s24, 0
      %p45 = por %p43, %p44
      %p46 = scmp.ne.s32.totalorder %s32, %s33
      %p47 = scmp.eq.s32.totalorder %s25, 1
      %p48 = por %p46, %p47
      %p50 = scmp.ne.s32.totalorder %s33, %s49
      %p51 = scmp.eq.s32.totalorder %s25, 0
      %p52 = por %p50, %p51
      %s54 = sadd.s32 %s53, 1
      %p57 = scmp.eq.s32.totalorder %s19, 1
      %p58 = scmp.ne.s32.totalorder %s53, %s55
      %p59 = scmp.eq.s32.totalorder %s19, 0
      %p60 = por %p58, %p59
      %p61 = scmp.ne.s32.totalorder %s53, %s55
      %p62 = scmp.eq.s32.totalorder %s24, 1
      %p63 = por %p61, %p62
      %p64 = scmp.ne.s32.totalorder %s55, %s56
      %p65 = scmp.eq.s32.totalorder %s24, 0
      %p66 = por %p64, %p65
      %p67 = scmp.ne.s32.totalorder %s55, %s56
      %p68 = scmp.eq.s32.totalorder %s25, 1
      %p69 = por %p67, %p68
      %p71 = scmp.ne.s32.totalorder %s56, %s70
      %p72 = scmp.eq.s32.totalorder %s25, 0
      %p73 = por %p71, %p72
      %s75 = sadd.s32 %s74, 1
      %p78 = scmp.eq.s32.totalorder %s19, 1
      %p79 = scmp.ne.s32.totalorder %s74, %s76
      %p80 = scmp.eq.s32.totalorder %s19, 0
      %p81 = por %p79, %p80
      %p82 = scmp.ne.s32.totalorder %s74, %s76
      %p83 = scmp.eq.s32.totalorder %s24, 1
      %p84 = por %p82, %p83
      %p85 = scmp.ne.s32.totalorder %s76, %s77
      %p86 = scmp.eq.s32.totalorder %s24, 0
      %p87 = por %p85, %p86
      %p88 = scmp.ne.s32.totalorder %s76, %s77
      %p89 = scmp.eq.s32.totalorder %s25, 1
      %p90 = por %p88, %p89
      %p92 = scmp.ne.s32.totalorder %s77, %s91
      %p93 = scmp.eq.s32.totalorder %s25, 0
      %p94 = por %p92, %p93
      %s96 = sadd.s32 %s95, 1
      %p99 = scmp.eq.s32.totalorder %s19, 1
      %p100 = scmp.ne.s32.totalorder %s95, %s97
      %p101 = scmp.eq.s32.totalorder %s19, 0
      %p102 = por %p100, %p101
      %p103 = scmp.ne.s32.totalorder %s95, %s97
      %p104 = scmp.eq.s32.totalorder %s24, 1
      %p105 = por %p103, %p104
      %p106 = scmp.ne.s32.totalorder %s97, %s98
      %p107 = scmp.eq.s32.totalorder %s24, 0
      %p108 = por %p106, %p107
      %p109 = scmp.ne.s32.totalorder %s97, %s98
      %p110 = scmp.eq.s32.totalorder %s25, 1
      %p111 = por %p109, %p110
      %p113 = scmp.ne.s32.totalorder %s98, %s112
      %p114 = scmp.eq.s32.totalorder %s25, 0
      %p115 = por %p113, %p114
      %s117 = sadd.s32 %s116, 1
      %p120 = scmp.eq.s32.totalorder %s19, 1
      %p121 = scmp.ne.s32.totalorder %s116, %s118
      %p122 = scmp.eq.s32.totalorder %s19, 0
      %p123 = por %p121, %p122
      %p124 = scmp.ne.s32.totalorder %s116, %s118
      %p125 = scmp.eq.s32.totalorder %s24, 1
      %p126 = por %p124, %p125
      %p127 = scmp.ne.s32.totalorder %s118, %s119
      %p128 = scmp.eq.s32.totalorder %s24, 0
      %p129 = por %p127, %p128
      %p130 = scmp.ne.s32.totalorder %s118, %s119
      %p131 = scmp.eq.s32.totalorder %s25, 1
      %p132 = por %p130, %p131
      %p134 = scmp.ne.s32.totalorder %s119, %s133
      %p135 = scmp.eq.s32.totalorder %s25, 0
      %p136 = por %p134, %p135
      %s137 = ssub.s32 %s19, %s26
      %p138 = scmp.eq.s32.totalorder %s137, 0
      %s140 = sadd.s32 %s139, 1
      %s141 = scalar_select %p138, %s139, %s140
      %p144 = pneg %p138
      %p145 = scmp.eq.s32.totalorder %s19, 1
      %p146 = por %p144, %p145
      %p147 = scmp.ne.s32.totalorder %s139, %s142
      %p148 = scmp.eq.s32.totalorder %s19, 0
      %p149 = por %p147, %p148
      %p150 = scmp.ne.s32.totalorder %s139, %s142
      %p151 = scmp.eq.s32.totalorder %s24, 1
      %p152 = por %p150, %p151
      %p153 = scmp.ne.s32.totalorder %s142, %s143
      %p154 = scmp.eq.s32.totalorder %s24, 0
      %p155 = por %p153, %p154
      %p156 = scmp.ne.s32.totalorder %s142, %s143
      %p157 = scmp.eq.s32.totalorder %s25, 1
      %p158 = por %p156, %p157
      %p160 = scmp.ne.s32.totalorder %s143, %s159
      %p161 = scmp.eq.s32.totalorder %s25, 0
      %p162 = por %p160, %p161
      %p163 = scmp.le.s32.totalorder 1, %s19
      %p164 = scmp.lt.s32.totalorder %s19, 3
      %p165 = pnand %p163, %p164
      %p166 = pneg %p165
      // Predicated region
      $region9: #{tpu_custom_call.1} parent=5 // pred_check
        _
      $region10: #{tpu_custom_call.1} parent=5 // pred_check_branch
        %168 = sbr.rel (%p165) target = $region12
      $region11: #{tpu_custom_call.1} parent=5 // pred_region
        %s169 = ssub.s32 %s19, 1
        // Predicated region
        $region13: #{tpu_custom_call.1} parent=11 // pred_check
          %p170 = pneg %p66
        $region14: #{tpu_custom_call.1} parent=11 // pred_check_branch
          %172 = sbr.rel (%p170) target = $region16
        $region15: #{tpu_custom_call.1} parent=11 // pred_region
          %174 = vsyncadd [#allocation7], 0
          %s175 = sshll.u32 %s1, 4
          %s176 = int_to_ptr.hbm [resolvable:$true] %s175
          %s177 = sshll.u32 [#allocation6], 4
          %s178 = int_to_ptr.vmem [resolvable:$true] %s177
          %183 = dma.hbm_to_vmem [thread:$0]  %s176, 1024, %s178, [#allocation7], 64, 64, 4
        $region16: #{tpu_custom_call.1} parent=11 // pred_fallthru
          _
        // Predicated region
        $region17: #{tpu_custom_call.1} parent=11 // pred_check
          %p184 = pneg %p87
        $region18: #{tpu_custom_call.1} parent=11 // pred_check_branch
          %186 = sbr.rel (%p184) target = $region20
        $region19: #{tpu_custom_call.1} parent=11 // pred_region
          _
        $region20: #{tpu_custom_call.1} parent=11 // pred_fallthru
          _
        // Predicated region
        $region21: #{tpu_custom_call.1} parent=11 // pred_check
          %p187 = pneg %p108
        $region22: #{tpu_custom_call.1} parent=11 // pred_check_branch
          %189 = sbr.rel (%p187) target = $region24
        $region23: #{tpu_custom_call.1} parent=11 // pred_region
          _
        $region24: #{tpu_custom_call.1} parent=11 // pred_fallthru
          _
        // Predicated region
        $region25: #{tpu_custom_call.1} parent=11 // pred_check
          %p190 = pneg %p129
        $region26: #{tpu_custom_call.1} parent=11 // pred_check_branch
          %192 = sbr.rel (%p190) target = $region28
        $region27: #{tpu_custom_call.1} parent=11 // pred_region
          _
        $region28: #{tpu_custom_call.1} parent=11 // pred_fallthru
          _
      $region12: #{tpu_custom_call.1} parent=5 // pred_fallthru
        _
      %p193 = scmp.lt.s32.totalorder %s19, 2
      // Predicated region
      $region29: #{tpu_custom_call.1} parent=5 // pred_check
        %p194 = pneg %p193
      $region30: #{tpu_custom_call.1} parent=5 // pred_check_branch
        %196 = sbr.rel (%p194) target = $region32
      $region31: #{tpu_custom_call.1} parent=5 // pred_region
        // Predicated region
        $region33: #{tpu_custom_call.1} parent=31 // pred_check
          %p197 = pneg %p39
        $region34: #{tpu_custom_call.1} parent=31 // pred_check_branch
          %199 = sbr.rel (%p197) target = $region36
        $region35: #{tpu_custom_call.1} parent=31 // pred_region
          %s200 = sand.u32 %s29, 1
          %s201 = scalar_lea.sflag [#allocation4], %s200
          %s202 = sand.u32 %s29, 1
          %s203 = smul.addr %s202, 256
          %s204 = scalar_lea.vmem [#allocation3], %s203
          %s205 = smul.u32 32, %s19
          %207 = vsyncadd %s201, 0
          %s208 = smul.addr %s205, 8
          %s209 = scalar_lea.hbm %s0, %s208
          %s210 = sshll.u32 %s209, 4
          %s211 = int_to_ptr.hbm [resolvable:$true] %s210
          %s212 = sshll.u32 %s204, 4
          %s213 = int_to_ptr.vmem [resolvable:$true] %s212
          %218 = dma.hbm_to_vmem [thread:$0]  %s211, 4096, %s213, %s201, 128, 128, 8
        $region36: #{tpu_custom_call.1} parent=31 // pred_fallthru
          _
      $region32: #{tpu_custom_call.1} parent=5 // pred_fallthru
        _
      %p219 = scmp.le.s32.totalorder 1, %s19
      %p220 = scmp.lt.s32.totalorder %s19, 3
      %p221 = pnand %p219, %p220
      %p222 = pneg %p221
      // Predicated region
      $region37: #{tpu_custom_call.1} parent=5 // pred_check
        _
      $region38: #{tpu_custom_call.1} parent=5 // pred_check_branch
        %224 = sbr.rel (%p221) target = $region40
      $region39: #{tpu_custom_call.1} parent=5 // pred_region
        %s225 = ssub.s32 %s19, 1
        %s226 = sand.u32 %s32, 1
        %s227 = scalar_lea.sflag [#allocation4], %s226
        %s228 = sand.u32 %s32, 1
        %s229 = smul.addr %s228, 256
        %s230 = scalar_lea.vmem [#allocation3], %s229
        // Predicated region
        $region41: #{tpu_custom_call.1} parent=39 // pred_check
          %p231 = pneg %p45
        $region42: #{tpu_custom_call.1} parent=39 // pred_check_branch
          %233 = sbr.rel (%p231) target = $region44
        $region43: #{tpu_custom_call.1} parent=39 // pred_region
          %235 = dma.done %s227, 4096
        $region44: #{tpu_custom_call.1} parent=39 // pred_fallthru
          _
        // Predicated region
        $region45: #{tpu_custom_call.1} parent=39 // pred_check
          %p236 = pneg %p66
        $region46: #{tpu_custom_call.1} parent=39 // pred_check_branch
          %238 = sbr.rel (%p236) target = $region48
        $region47: #{tpu_custom_call.1} parent=39 // pred_region
          %240 = dma.done [#allocation7], 1024
        $region48: #{tpu_custom_call.1} parent=39 // pred_fallthru
          _
        %s241 = sand.u32 %s32, 1
        %s242 = scalar_lea.sflag [#allocation4], %s241
        %s243 = sand.u32 %s32, 1
        %s244 = smul.addr %s243, 256
        %s245 = scalar_lea.vmem [#allocation3], %s244
        %p246 = pneg %p45
        %p247 = pneg %p42
        %p248 = pneg %p66
        %p249 = pneg %p63
        %p250 = pneg %p87
        %p251 = pneg %p84
        %p252 = pneg %p108
        %p253 = pneg %p105
        %p254 = pneg %p129
        %p255 = pneg %p126
        %p256 = pneg %p155
        %p257 = pneg %p152
        %s258 = sand.u32 %s142, 1
        %s259 = scalar_lea.sflag [#allocation5], %s258
        %s260 = sand.u32 %s142, 1
        %s261 = smul.addr %s260, 256
        %s262 = scalar_lea.vmem [#allocation8], %s261
        %s263 = smul.u32 32, %s24
        %s264 = smul.u32 32, %s24
        %v265 = vld [vmem:[%s230] sm:$0xff]
        %v266 = vld [vmem:[%s230 + $0x8] sm:$0xff]
        %v267 = vld [vmem:[%s230 + $0x10] sm:$0xff]
        %v268 = vld [vmem:[%s230 + $0x18] sm:$0xff]
        %v269 = vld [vmem:[%s230 + $0x20] sm:$0xff]
        %v270 = vld [vmem:[%s230 + $0x28] sm:$0xff]
        %v271 = vld [vmem:[%s230 + $0x30] sm:$0xff]
        %v272 = vld [vmem:[%s230 + $0x38] sm:$0xff]
        %v273 = vld [vmem:[%s230 + $0x40] sm:$0xff]
        %v274 = vld [vmem:[%s230 + $0x48] sm:$0xff]
        %v275 = vld [vmem:[%s230 + $0x50] sm:$0xff]
        %v276 = vld [vmem:[%s230 + $0x58] sm:$0xff]
        %v277 = vld [vmem:[%s230 + $0x60] sm:$0xff]
        %v278 = vld [vmem:[%s230 + $0x68] sm:$0xff]
        %v279 = vld [vmem:[%s230 + $0x70] sm:$0xff]
        %v280 = vld [vmem:[%s230 + $0x78] sm:$0xff]
        %v281 = vld [vmem:[%s230 + $0x80] sm:$0xff]
        %v282 = vld [vmem:[%s230 + $0x88] sm:$0xff]
        %v283 = vld [vmem:[%s230 + $0x90] sm:$0xff]
        %v284 = vld [vmem:[%s230 + $0x98] sm:$0xff]
        %v285 = vld [vmem:[%s230 + $0xa0] sm:$0xff]
        %v286 = vld [vmem:[%s230 + $0xa8] sm:$0xff]
        %v287 = vld [vmem:[%s230 + $0xb0] sm:$0xff]
        %v288 = vld [vmem:[%s230 + $0xb8] sm:$0xff]
        %v289 = vld [vmem:[%s230 + $0xc0] sm:$0xff]
        %v290 = vld [vmem:[%s230 + $0xc8] sm:$0xff]
        %v291 = vld [vmem:[%s230 + $0xd0] sm:$0xff]
        %v292 = vld [vmem:[%s230 + $0xd8] sm:$0xff]
        %v293 = vld [vmem:[%s230 + $0xe0] sm:$0xff]
        %v294 = vld [vmem:[%s230 + $0xe8] sm:$0xff]
        %v295 = vld [vmem:[%s230 + $0xf0] sm:$0xff]
        %v296 = vld [vmem:[%s230 + $0xf8] sm:$0xff]
        %v297 = vpack.c.bf16 %v266, %v265
        %v298 = vpack.c.bf16 %v268, %v267
        %v299 = vpack.c.bf16 %v270, %v269
        %v300 = vpack.c.bf16 %v272, %v271
        %v301 = vpack.c.bf16 %v274, %v273
        %v302 = vpack.c.bf16 %v276, %v275
        %v303 = vpack.c.bf16 %v278, %v277
        %v304 = vpack.c.bf16 %v280, %v279
        %v305 = vpack.c.bf16 %v282, %v281
        %v306 = vpack.c.bf16 %v284, %v283
        %v307 = vpack.c.bf16 %v286, %v285
        %v308 = vpack.c.bf16 %v288, %v287
        %v309 = vpack.c.bf16 %v290, %v289
        %v310 = vpack.c.bf16 %v292, %v291
        %v311 = vpack.c.bf16 %v294, %v293
        %v312 = vpack.c.bf16 %v296, %v295
        %v313 = vld [vmem:[#allocation6] sm:$0xf]
        %v314 = vld [vmem:[#allocation6 + $0x4] sm:$0xf]
        %v315 = vld [vmem:[#allocation6 + $0x8] sm:$0xf]
        %v316 = vld [vmem:[#allocation6 + $0xc] sm:$0xf]
        %v317 = vld [vmem:[#allocation6 + $0x10] sm:$0xf]
        %v318 = vld [vmem:[#allocation6 + $0x14] sm:$0xf]
        %v319 = vld [vmem:[#allocation6 + $0x18] sm:$0xf]
        %v320 = vld [vmem:[#allocation6 + $0x1c] sm:$0xf]
        %v321 = vld [vmem:[#allocation6 + $0x20] sm:$0xf]
        %v322 = vld [vmem:[#allocation6 + $0x24] sm:$0xf]
        %v323 = vld [vmem:[#allocation6 + $0x28] sm:$0xf]
        %v324 = vld [vmem:[#allocation6 + $0x2c] sm:$0xf]
        %v325 = vld [vmem:[#allocation6 + $0x30] sm:$0xf]
        %v326 = vld [vmem:[#allocation6 + $0x34] sm:$0xf]
        %v327 = vld [vmem:[#allocation6 + $0x38] sm:$0xf]
        %v328 = vld [vmem:[#allocation6 + $0x3c] sm:$0xf]
        %v329 = vld [vmem:[%s2] sm:$0x1]
        %v331 = vperm.slane %v329, 0
        %v349 = vunpack.c.l.b16 %v313
        %v350 = vunpack.c.l.b16 %v314
        %v351 = vunpack.c.l.b16 %v315
        %v352 = vunpack.c.l.b16 %v316
        %v353 = vunpack.c.l.b16 %v317
        %v354 = vunpack.c.l.b16 %v318
        %v355 = vunpack.c.l.b16 %v319
        %v356 = vunpack.c.l.b16 %v320
        %v357 = vunpack.c.l.b16 %v321
        %v358 = vunpack.c.l.b16 %v322
        %v359 = vunpack.c.l.b16 %v323
        %v360 = vunpack.c.l.b16 %v324
        %v361 = vunpack.c.l.b16 %v325
        %v362 = vunpack.c.l.b16 %v326
        %v363 = vunpack.c.l.b16 %v327
        %v364 = vunpack.c.l.b16 %v328
        %v365 = vpack.c.b16 %v350, %v349
        %v366 = vpack.c.b16 %v352, %v351
        %v367 = vpack.c.b16 %v354, %v353
        %v368 = vpack.c.b16 %v356, %v355
        %v369 = vpack.c.b16 %v358, %v357
        %v370 = vpack.c.b16 %v360, %v359
        %v371 = vpack.c.b16 %v362, %v361
        %v372 = vpack.c.b16 %v364, %v363
        %381 = vmatpush.bf16.msra.mxu0 %v372
        %382 = vmatpush.bf16.msra.mxu0 %v371
        %383 = vmatpush.bf16.msra.mxu0 %v370
        %384 = vmatpush.bf16.msra.mxu0 %v369
        %385 = vmatpush.bf16.msra.mxu0 %v368
        %386 = vmatpush.bf16.msra.mxu0 %v367
        %387 = vmatpush.bf16.msra.mxu0 %v366
        %388 = vmatpush.bf16.msra.mxu0 %v365
        %389 = vmatmul.bf16.gmra.mxu0 %v297
        %v390 = vpop.f32.mrf.mxu0
        %v391 = vadd.f32 %v331, %v390
        %v392 = vpop.f32.mrf.mxu0
        %v393 = vadd.f32 %v331, %v392
        %394 = vmatmul.bf16.gmra.mxu0 %v298
        %v395 = vpop.f32.mrf.mxu0
        %v396 = vadd.f32 %v331, %v395
        %v397 = vpop.f32.mrf.mxu0
        %v398 = vadd.f32 %v331, %v397
        %399 = vmatmul.bf16.gmra.mxu0 %v299
        %v400 = vpop.f32.mrf.mxu0
        %v401 = vadd.f32 %v331, %v400
        %v402 = vpop.f32.mrf.mxu0
        %v403 = vadd.f32 %v331, %v402
        %404 = vmatmul.bf16.gmra.mxu0 %v300
        %v405 = vpop.f32.mrf.mxu0
        %v406 = vadd.f32 %v331, %v405
        %v407 = vpop.f32.mrf.mxu0
        %v408 = vadd.f32 %v331, %v407
        %409 = vmatmul.bf16.gmra.mxu0 %v301
        %v410 = vpop.f32.mrf.mxu0
        %v411 = vadd.f32 %v331, %v410
        %v412 = vpop.f32.mrf.mxu0
        %v413 = vadd.f32 %v331, %v412
        %414 = vmatmul.bf16.gmra.mxu0 %v302
        %v415 = vpop.f32.mrf.mxu0
        %v416 = vadd.f32 %v331, %v415
        %v417 = vpop.f32.mrf.mxu0
        %v418 = vadd.f32 %v331, %v417
        %419 = vmatmul.bf16.gmra.mxu0 %v303
        %v420 = vpop.f32.mrf.mxu0
        %v421 = vadd.f32 %v331, %v420
        %v422 = vpop.f32.mrf.mxu0
        %v423 = vadd.f32 %v331, %v422
        %424 = vmatmul.bf16.gmra.mxu0 %v304
        %v425 = vpop.f32.mrf.mxu0
        %v426 = vadd.f32 %v331, %v425
        %v427 = vpop.f32.mrf.mxu0
        %v428 = vadd.f32 %v331, %v427
        %429 = vmatmul.bf16.gmra.mxu0 %v305
        %v430 = vpop.f32.mrf.mxu0
        %v431 = vadd.f32 %v331, %v430
        %v432 = vpop.f32.mrf.mxu0
        %v433 = vadd.f32 %v331, %v432
        %434 = vmatmul.bf16.gmra.mxu0 %v306
        %v435 = vpop.f32.mrf.mxu0
        %v436 = vadd.f32 %v331, %v435
        %v437 = vpop.f32.mrf.mxu0
        %v438 = vadd.f32 %v331, %v437
        %439 = vmatmul.bf16.gmra.mxu0 %v307
        %v440 = vpop.f32.mrf.mxu0
        %v441 = vadd.f32 %v331, %v440
        %v442 = vpop.f32.mrf.mxu0
        %v443 = vadd.f32 %v331, %v442
        %444 = vmatmul.bf16.gmra.mxu0 %v308
        %v445 = vpop.f32.mrf.mxu0
        %v446 = vadd.f32 %v331, %v445
        %v447 = vpop.f32.mrf.mxu0
        %v448 = vadd.f32 %v331, %v447
        %449 = vmatmul.bf16.gmra.mxu0 %v309
        %v450 = vpop.f32.mrf.mxu0
        %v451 = vadd.f32 %v331, %v450
        %v452 = vpop.f32.mrf.mxu0
        %v453 = vadd.f32 %v331, %v452
        %454 = vmatmul.bf16.gmra.mxu0 %v310
        %v455 = vpop.f32.mrf.mxu0
        %v456 = vadd.f32 %v331, %v455
        %v457 = vpop.f32.mrf.mxu0
        %v458 = vadd.f32 %v331, %v457
        %459 = vmatmul.bf16.gmra.mxu0 %v311
        %v460 = vpop.f32.mrf.mxu0
        %v461 = vadd.f32 %v331, %v460
        %v462 = vpop.f32.mrf.mxu0
        %v463 = vadd.f32 %v331, %v462
        %464 = vmatmul.bf16.gmra.mxu0 %v312
        %v465 = vpop.f32.mrf.mxu0
        %v466 = vadd.f32 %v331, %v465
        %v467 = vpop.f32.mrf.mxu0
        %v468 = vadd.f32 %v331, %v467
        %469 = vdwg.mxu0
        %v470 = vmax.f32 %v391, 0.0
        %v471 = vmax.f32 %v393, 0.0
        %v472 = vmax.f32 %v396, 0.0
        %v473 = vmax.f32 %v398, 0.0
        %v474 = vmax.f32 %v401, 0.0
        %v475 = vmax.f32 %v403, 0.0
        %v476 = vmax.f32 %v406, 0.0
        %v477 = vmax.f32 %v408, 0.0
        %v478 = vmax.f32 %v411, 0.0
        %v479 = vmax.f32 %v413, 0.0
        %v480 = vmax.f32 %v416, 0.0
        %v481 = vmax.f32 %v418, 0.0
        %v482 = vmax.f32 %v421, 0.0
        %v483 = vmax.f32 %v423, 0.0
        %v484 = vmax.f32 %v426, 0.0
        %v485 = vmax.f32 %v428, 0.0
        %v486 = vmax.f32 %v431, 0.0
        %v487 = vmax.f32 %v433, 0.0
        %v488 = vmax.f32 %v436, 0.0
        %v489 = vmax.f32 %v438, 0.0
        %v490 = vmax.f32 %v441, 0.0
        %v491 = vmax.f32 %v443, 0.0
        %v492 = vmax.f32 %v446, 0.0
        %v493 = vmax.f32 %v448, 0.0
        %v494 = vmax.f32 %v451, 0.0
        %v495 = vmax.f32 %v453, 0.0
        %v496 = vmax.f32 %v456, 0.0
        %v497 = vmax.f32 %v458, 0.0
        %v498 = vmax.f32 %v461, 0.0
        %v499 = vmax.f32 %v463, 0.0
        %v500 = vmax.f32 %v466, 0.0
        %v501 = vmax.f32 %v468, 0.0
        %v502 = vld [vmem:[%s3] sm:$0x1]
        %v504 = vperm.slane %v502, 0
        %v506 = vmul.f32 %v265, %v504
        %v507 = vmul.f32 %v266, %v504
        %v508 = vmul.f32 %v267, %v504
        %v509 = vmul.f32 %v268, %v504
        %v510 = vmul.f32 %v269, %v504
        %v511 = vmul.f32 %v270, %v504
        %v512 = vmul.f32 %v271, %v504
        %v513 = vmul.f32 %v272, %v504
        %v514 = vmul.f32 %v273, %v504
        %v515 = vmul.f32 %v274, %v504
        %v516 = vmul.f32 %v275, %v504
        %v517 = vmul.f32 %v276, %v504
        %v518 = vmul.f32 %v277, %v504
        %v519 = vmul.f32 %v278, %v504
        %v520 = vmul.f32 %v279, %v504
        %v521 = vmul.f32 %v280, %v504
        %v522 = vmul.f32 %v281, %v504
        %v523 = vmul.f32 %v282, %v504
        %v524 = vmul.f32 %v283, %v504
        %v525 = vmul.f32 %v284, %v504
        %v526 = vmul.f32 %v285, %v504
        %v527 = vmul.f32 %v286, %v504
        %v528 = vmul.f32 %v287, %v504
        %v529 = vmul.f32 %v288, %v504
        %v530 = vmul.f32 %v289, %v504
        %v531 = vmul.f32 %v290, %v504
        %v532 = vmul.f32 %v291, %v504
        %v533 = vmul.f32 %v292, %v504
        %v534 = vmul.f32 %v293, %v504
        %v535 = vmul.f32 %v294, %v504
        %v536 = vmul.f32 %v295, %v504
        %v537 = vmul.f32 %v296, %v504
        %538 = vadd.xlane.f32.xlu0 %v506
        %v539 = vpop.xlane.xlu0 %538
        %540 = vadd.xlane.f32.xlu0 %v507
        %v541 = vpop.xlane.xlu0 %540
        %542 = vadd.xlane.f32.xlu0 %v508
        %v543 = vpop.xlane.xlu0 %542
        %544 = vadd.xlane.f32.xlu0 %v509
        %v545 = vpop.xlane.xlu0 %544
        %546 = vadd.xlane.f32.xlu0 %v510
        %v547 = vpop.xlane.xlu0 %546
        %548 = vadd.xlane.f32.xlu0 %v511
        %v549 = vpop.xlane.xlu0 %548
        %550 = vadd.xlane.f32.xlu0 %v512
        %v551 = vpop.xlane.xlu0 %550
        %552 = vadd.xlane.f32.xlu0 %v513
        %v553 = vpop.xlane.xlu0 %552
        %554 = vadd.xlane.f32.xlu0 %v514
        %v555 = vpop.xlane.xlu0 %554
        %556 = vadd.xlane.f32.xlu0 %v515
        %v557 = vpop.xlane.xlu0 %556
        %558 = vadd.xlane.f32.xlu0 %v516
        %v559 = vpop.xlane.xlu0 %558
        %560 = vadd.xlane.f32.xlu0 %v517
        %v561 = vpop.xlane.xlu0 %560
        %562 = vadd.xlane.f32.xlu0 %v518
        %v563 = vpop.xlane.xlu0 %562
        %564 = vadd.xlane.f32.xlu0 %v519
        %v565 = vpop.xlane.xlu0 %564
        %566 = vadd.xlane.f32.xlu0 %v520
        %v567 = vpop.xlane.xlu0 %566
        %568 = vadd.xlane.f32.xlu0 %v521
        %v569 = vpop.xlane.xlu0 %568
        %570 = vadd.xlane.f32.xlu0 %v522
        %v571 = vpop.xlane.xlu0 %570
        %572 = vadd.xlane.f32.xlu0 %v523
        %v573 = vpop.xlane.xlu0 %572
        %574 = vadd.xlane.f32.xlu0 %v524
        %v575 = vpop.xlane.xlu0 %574
        %576 = vadd.xlane.f32.xlu0 %v525
        %v577 = vpop.xlane.xlu0 %576
        %578 = vadd.xlane.f32.xlu0 %v526
        %v579 = vpop.xlane.xlu0 %578
        %580 = vadd.xlane.f32.xlu0 %v527
        %v581 = vpop.xlane.xlu0 %580
        %582 = vadd.xlane.f32.xlu0 %v528
        %v583 = vpop.xlane.xlu0 %582
        %584 = vadd.xlane.f32.xlu0 %v529
        %v585 = vpop.xlane.xlu0 %584
        %586 = vadd.xlane.f32.xlu0 %v530
        %v587 = vpop.xlane.xlu0 %586
        %588 = vadd.xlane.f32.xlu0 %v531
        %v589 = vpop.xlane.xlu0 %588
        %590 = vadd.xlane.f32.xlu0 %v532
        %v591 = vpop.xlane.xlu0 %590
        %592 = vadd.xlane.f32.xlu0 %v533
        %v593 = vpop.xlane.xlu0 %592
        %594 = vadd.xlane.f32.xlu0 %v534
        %v595 = vpop.xlane.xlu0 %594
        %596 = vadd.xlane.f32.xlu0 %v535
        %v597 = vpop.xlane.xlu0 %596
        %598 = vadd.xlane.f32.xlu0 %v536
        %v599 = vpop.xlane.xlu0 %598
        %600 = vadd.xlane.f32.xlu0 %v537
        %v601 = vpop.xlane.xlu0 %600
        %s602 = sld [smem:[#allocation2]]
        %v603 = vstv %s602
        %v604 = vadd.f32 %v539, %v603
        %v605 = vadd.f32 %v541, %v603
        %v606 = vadd.f32 %v543, %v603
        %v607 = vadd.f32 %v545, %v603
        %v608 = vadd.f32 %v547, %v603
        %v609 = vadd.f32 %v549, %v603
        %v610 = vadd.f32 %v551, %v603
        %v611 = vadd.f32 %v553, %v603
        %v612 = vadd.f32 %v555, %v603
        %v613 = vadd.f32 %v557, %v603
        %v614 = vadd.f32 %v559, %v603
        %v615 = vadd.f32 %v561, %v603
        %v616 = vadd.f32 %v563, %v603
        %v617 = vadd.f32 %v565, %v603
        %v618 = vadd.f32 %v567, %v603
        %v619 = vadd.f32 %v569, %v603
        %v620 = vadd.f32 %v571, %v603
        %v621 = vadd.f32 %v573, %v603
        %v622 = vadd.f32 %v575, %v603
        %v623 = vadd.f32 %v577, %v603
        %v624 = vadd.f32 %v579, %v603
        %v625 = vadd.f32 %v581, %v603
        %v626 = vadd.f32 %v583, %v603
        %v627 = vadd.f32 %v585, %v603
        %v628 = vadd.f32 %v587, %v603
        %v629 = vadd.f32 %v589, %v603
        %v630 = vadd.f32 %v591, %v603
        %v631 = vadd.f32 %v593, %v603
        %v632 = vadd.f32 %v595, %v603
        %v633 = vadd.f32 %v597, %v603
        %v634 = vadd.f32 %v599, %v603
        %v635 = vadd.f32 %v601, %v603
        %v636 = vxor.u32 %v604, 2147483648
        %v637 = vxor.u32 %v605, 2147483648
        %v638 = vxor.u32 %v606, 2147483648
        %v639 = vxor.u32 %v607, 2147483648
        %v640 = vxor.u32 %v608, 2147483648
        %v641 = vxor.u32 %v609, 2147483648
        %v642 = vxor.u32 %v610, 2147483648
        %v643 = vxor.u32 %v611, 2147483648
        %v644 = vxor.u32 %v612, 2147483648
        %v645 = vxor.u32 %v613, 2147483648
        %v646 = vxor.u32 %v614, 2147483648
        %v647 = vxor.u32 %v615, 2147483648
        %v648 = vxor.u32 %v616, 2147483648
        %v649 = vxor.u32 %v617, 2147483648
        %v650 = vxor.u32 %v618, 2147483648
        %v651 = vxor.u32 %v619, 2147483648
        %v652 = vxor.u32 %v620, 2147483648
        %v653 = vxor.u32 %v621, 2147483648
        %v654 = vxor.u32 %v622, 2147483648
        %v655 = vxor.u32 %v623, 2147483648
        %v656 = vxor.u32 %v624, 2147483648
        %v657 = vxor.u32 %v625, 2147483648
        %v658 = vxor.u32 %v626, 2147483648
        %v659 = vxor.u32 %v627, 2147483648
        %v660 = vxor.u32 %v628, 2147483648
        %v661 = vxor.u32 %v629, 2147483648
        %v662 = vxor.u32 %v630, 2147483648
        %v663 = vxor.u32 %v631, 2147483648
        %v664 = vxor.u32 %v632, 2147483648
        %v665 = vxor.u32 %v633, 2147483648
        %v666 = vxor.u32 %v634, 2147483648
        %v667 = vxor.u32 %v635, 2147483648
        %v668 = vmul.f32 %v636, 1.442695
        %v669 = vpow.pop %v668
        %v670 = vmul.f32 %v637, 1.442695
        %v671 = vpow.pop %v670
        %v672 = vmul.f32 %v638, 1.442695
        %v673 = vpow.pop %v672
        %v674 = vmul.f32 %v639, 1.442695
        %v675 = vpow.pop %v674
        %v676 = vmul.f32 %v640, 1.442695
        %v677 = vpow.pop %v676
        %v678 = vmul.f32 %v641, 1.442695
        %v679 = vpow.pop %v678
        %v680 = vmul.f32 %v642, 1.442695
        %v681 = vpow.pop %v680
        %v682 = vmul.f32 %v643, 1.442695
        %v683 = vpow.pop %v682
        %v684 = vmul.f32 %v644, 1.442695
        %v685 = vpow.pop %v684
        %v686 = vmul.f32 %v645, 1.442695
        %v687 = vpow.pop %v686
        %v688 = vmul.f32 %v646, 1.442695
        %v689 = vpow.pop %v688
        %v690 = vmul.f32 %v647, 1.442695
        %v691 = vpow.pop %v690
        %v692 = vmul.f32 %v648, 1.442695
        %v693 = vpow.pop %v692
        %v694 = vmul.f32 %v649, 1.442695
        %v695 = vpow.pop %v694
        %v696 = vmul.f32 %v650, 1.442695
        %v697 = vpow.pop %v696
        %v698 = vmul.f32 %v651, 1.442695
        %v699 = vpow.pop %v698
        %v700 = vmul.f32 %v652, 1.442695
        %v701 = vpow.pop %v700
        %v702 = vmul.f32 %v653, 1.442695
        %v703 = vpow.pop %v702
        %v704 = vmul.f32 %v654, 1.442695
        %v705 = vpow.pop %v704
        %v706 = vmul.f32 %v655, 1.442695
        %v707 = vpow.pop %v706
        %v708 = vmul.f32 %v656, 1.442695
        %v709 = vpow.pop %v708
        %v710 = vmul.f32 %v657, 1.442695
        %v711 = vpow.pop %v710
        %v712 = vmul.f32 %v658, 1.442695
        %v713 = vpow.pop %v712
        %v714 = vmul.f32 %v659, 1.442695
        %v715 = vpow.pop %v714
        %v716 = vmul.f32 %v660, 1.442695
        %v717 = vpow.pop %v716
        %v718 = vmul.f32 %v661, 1.442695
        %v719 = vpow.pop %v718
        %v720 = vmul.f32 %v662, 1.442695
        %v721 = vpow.pop %v720
        %v722 = vmul.f32 %v663, 1.442695
        %v723 = vpow.pop %v722
        %v724 = vmul.f32 %v664, 1.442695
        %v725 = vpow.pop %v724
        %v726 = vmul.f32 %v665, 1.442695
        %v727 = vpow.pop %v726
        %v728 = vmul.f32 %v666, 1.442695
        %v729 = vpow.pop %v728
        %v730 = vmul.f32 %v667, 1.442695
        %v731 = vpow.pop %v730
        %v732 = vadd.f32 %v669, 1.0
        %v733 = vadd.f32 %v671, 1.0
        %v734 = vadd.f32 %v673, 1.0
        %v735 = vadd.f32 %v675, 1.0
        %v736 = vadd.f32 %v677, 1.0
        %v737 = vadd.f32 %v679, 1.0
        %v738 = vadd.f32 %v681, 1.0
        %v739 = vadd.f32 %v683, 1.0
        %v740 = vadd.f32 %v685, 1.0
        %v741 = vadd.f32 %v687, 1.0
        %v742 = vadd.f32 %v689, 1.0
        %v743 = vadd.f32 %v691, 1.0
        %v744 = vadd.f32 %v693, 1.0
        %v745 = vadd.f32 %v695, 1.0
        %v746 = vadd.f32 %v697, 1.0
        %v747 = vadd.f32 %v699, 1.0
        %v748 = vadd.f32 %v701, 1.0
        %v749 = vadd.f32 %v703, 1.0
        %v750 = vadd.f32 %v705, 1.0
        %v751 = vadd.f32 %v707, 1.0
        %v752 = vadd.f32 %v709, 1.0
        %v753 = vadd.f32 %v711, 1.0
        %v754 = vadd.f32 %v713, 1.0
        %v755 = vadd.f32 %v715, 1.0
        %v756 = vadd.f32 %v717, 1.0
        %v757 = vadd.f32 %v719, 1.0
        %v758 = vadd.f32 %v721, 1.0
        %v759 = vadd.f32 %v723, 1.0
        %v760 = vadd.f32 %v725, 1.0
        %v761 = vadd.f32 %v727, 1.0
        %v762 = vadd.f32 %v729, 1.0
        %v763 = vadd.f32 %v731, 1.0
        %v764 = vrcp.pop %v732
        %v765 = vmul.f32 %v732, %v764
        %v766 = vsub.f32 1.0, %v765
        %v767 = vmul.f32 %v764, %v766
        %v768 = vadd.f32 %v764, %v767
        %vm769 = vweird.f32 %v732
        %vm770 = vweird.f32 %v764
        %vm771 = vmor %vm769, %vm770
        %v772 = vsel %vm771, %v764, %v768
        %v773 = vand.u32 2147483647, %v732
        %vm774 = vcmp.eq.f32.partialorder %v773, 8.507059e+37
        %v775 = vand.u32 %v732, 2147483648
        %v776 = vor.u32 1.1754944e-38, %v775
        %v777 = vsel %vm774, %v776, %v772
        %v778 = vmul.f32 1.0, %v777
        %v779 = vrcp.pop %v733
        %v780 = vmul.f32 %v733, %v779
        %v781 = vsub.f32 1.0, %v780
        %v782 = vmul.f32 %v779, %v781
        %v783 = vadd.f32 %v779, %v782
        %vm784 = vweird.f32 %v733
        %vm785 = vweird.f32 %v779
        %vm786 = vmor %vm784, %vm785
        %v787 = vsel %vm786, %v779, %v783
        %v788 = vand.u32 2147483647, %v733
        %vm789 = vcmp.eq.f32.partialorder %v788, 8.507059e+37
        %v790 = vand.u32 %v733, 2147483648
        %v791 = vor.u32 1.1754944e-38, %v790
        %v792 = vsel %vm789, %v791, %v787
        %v793 = vmul.f32 1.0, %v792
        %v794 = vrcp.pop %v734
        %v795 = vmul.f32 %v734, %v794
        %v796 = vsub.f32 1.0, %v795
        %v797 = vmul.f32 %v794, %v796
        %v798 = vadd.f32 %v794, %v797
        %vm799 = vweird.f32 %v734
        %vm800 = vweird.f32 %v794
        %vm801 = vmor %vm799, %vm800
        %v802 = vsel %vm801, %v794, %v798
        %v803 = vand.u32 2147483647, %v734
        %vm804 = vcmp.eq.f32.partialorder %v803, 8.507059e+37
        %v805 = vand.u32 %v734, 2147483648
        %v806 = vor.u32 1.1754944e-38, %v805
        %v807 = vsel %vm804, %v806, %v802
        %v808 = vmul.f32 1.0, %v807
        %v809 = vrcp.pop %v735
        %v810 = vmul.f32 %v735, %v809
        %v811 = vsub.f32 1.0, %v810
        %v812 = vmul.f32 %v809, %v811
        %v813 = vadd.f32 %v809, %v812
        %vm814 = vweird.f32 %v735
        %vm815 = vweird.f32 %v809
        %vm816 = vmor %vm814, %vm815
        %v817 = vsel %vm816, %v809, %v813
        %v818 = vand.u32 2147483647, %v735
        %vm819 = vcmp.eq.f32.partialorder %v818, 8.507059e+37
        %v820 = vand.u32 %v735, 2147483648
        %v821 = vor.u32 1.1754944e-38, %v820
        %v822 = vsel %vm819, %v821, %v817
        %v823 = vmul.f32 1.0, %v822
        %v824 = vrcp.pop %v736
        %v825 = vmul.f32 %v736, %v824
        %v826 = vsub.f32 1.0, %v825
        %v827 = vmul.f32 %v824, %v826
        %v828 = vadd.f32 %v824, %v827
        %vm829 = vweird.f32 %v736
        %vm830 = vweird.f32 %v824
        %vm831 = vmor %vm829, %vm830
        %v832 = vsel %vm831, %v824, %v828
        %v833 = vand.u32 2147483647, %v736
        %vm834 = vcmp.eq.f32.partialorder %v833, 8.507059e+37
        %v835 = vand.u32 %v736, 2147483648
        %v836 = vor.u32 1.1754944e-38, %v835
        %v837 = vsel %vm834, %v836, %v832
        %v838 = vmul.f32 1.0, %v837
        %v839 = vrcp.pop %v737
        %v840 = vmul.f32 %v737, %v839
        %v841 = vsub.f32 1.0, %v840
        %v842 = vmul.f32 %v839, %v841
        %v843 = vadd.f32 %v839, %v842
        %vm844 = vweird.f32 %v737
        %vm845 = vweird.f32 %v839
        %vm846 = vmor %vm844, %vm845
        %v847 = vsel %vm846, %v839, %v843
        %v848 = vand.u32 2147483647, %v737
        %vm849 = vcmp.eq.f32.partialorder %v848, 8.507059e+37
        %v850 = vand.u32 %v737, 2147483648
        %v851 = vor.u32 1.1754944e-38, %v850
        %v852 = vsel %vm849, %v851, %v847
        %v853 = vmul.f32 1.0, %v852
        %v854 = vrcp.pop %v738
        %v855 = vmul.f32 %v738, %v854
        %v856 = vsub.f32 1.0, %v855
        %v857 = vmul.f32 %v854, %v856
        %v858 = vadd.f32 %v854, %v857
        %vm859 = vweird.f32 %v738
        %vm860 = vweird.f32 %v854
        %vm861 = vmor %vm859, %vm860
        %v862 = vsel %vm861, %v854, %v858
        %v863 = vand.u32 2147483647, %v738
        %vm864 = vcmp.eq.f32.partialorder %v863, 8.507059e+37
        %v865 = vand.u32 %v738, 2147483648
        %v866 = vor.u32 1.1754944e-38, %v865
        %v867 = vsel %vm864, %v866, %v862
        %v868 = vmul.f32 1.0, %v867
        %v869 = vrcp.pop %v739
        %v870 = vmul.f32 %v739, %v869
        %v871 = vsub.f32 1.0, %v870
        %v872 = vmul.f32 %v869, %v871
        %v873 = vadd.f32 %v869, %v872
        %vm874 = vweird.f32 %v739
        %vm875 = vweird.f32 %v869
        %vm876 = vmor %vm874, %vm875
        %v877 = vsel %vm876, %v869, %v873
        %v878 = vand.u32 2147483647, %v739
        %vm879 = vcmp.eq.f32.partialorder %v878, 8.507059e+37
        %v880 = vand.u32 %v739, 2147483648
        %v881 = vor.u32 1.1754944e-38, %v880
        %v882 = vsel %vm879, %v881, %v877
        %v883 = vmul.f32 1.0, %v882
        %v884 = vrcp.pop %v740
        %v885 = vmul.f32 %v740, %v884
        %v886 = vsub.f32 1.0, %v885
        %v887 = vmul.f32 %v884, %v886
        %v888 = vadd.f32 %v884, %v887
        %vm889 = vweird.f32 %v740
        %vm890 = vweird.f32 %v884
        %vm891 = vmor %vm889, %vm890
        %v892 = vsel %vm891, %v884, %v888
        %v893 = vand.u32 2147483647, %v740
        %vm894 = vcmp.eq.f32.partialorder %v893, 8.507059e+37
        %v895 = vand.u32 %v740, 2147483648
        %v896 = vor.u32 1.1754944e-38, %v895
        %v897 = vsel %vm894, %v896, %v892
        %v898 = vmul.f32 1.0, %v897
        %v899 = vrcp.pop %v741
        %v900 = vmul.f32 %v741, %v899
        %v901 = vsub.f32 1.0, %v900
        %v902 = vmul.f32 %v899, %v901
        %v903 = vadd.f32 %v899, %v902
        %vm904 = vweird.f32 %v741
        %vm905 = vweird.f32 %v899
        %vm906 = vmor %vm904, %vm905
        %v907 = vsel %vm906, %v899, %v903
        %v908 = vand.u32 2147483647, %v741
        %vm909 = vcmp.eq.f32.partialorder %v908, 8.507059e+37
        %v910 = vand.u32 %v741, 2147483648
        %v911 = vor.u32 1.1754944e-38, %v910
        %v912 = vsel %vm909, %v911, %v907
        %v913 = vmul.f32 1.0, %v912
        %v914 = vrcp.pop %v742
        %v915 = vmul.f32 %v742, %v914
        %v916 = vsub.f32 1.0, %v915
        %v917 = vmul.f32 %v914, %v916
        %v918 = vadd.f32 %v914, %v917
        %vm919 = vweird.f32 %v742
        %vm920 = vweird.f32 %v914
        %vm921 = vmor %vm919, %vm920
        %v922 = vsel %vm921, %v914, %v918
        %v923 = vand.u32 2147483647, %v742
        %vm924 = vcmp.eq.f32.partialorder %v923, 8.507059e+37
        %v925 = vand.u32 %v742, 2147483648
        %v926 = vor.u32 1.1754944e-38, %v925
        %v927 = vsel %vm924, %v926, %v922
        %v928 = vmul.f32 1.0, %v927
        %v929 = vrcp.pop %v743
        %v930 = vmul.f32 %v743, %v929
        %v931 = vsub.f32 1.0, %v930
        %v932 = vmul.f32 %v929, %v931
        %v933 = vadd.f32 %v929, %v932
        %vm934 = vweird.f32 %v743
        %vm935 = vweird.f32 %v929
        %vm936 = vmor %vm934, %vm935
        %v937 = vsel %vm936, %v929, %v933
        %v938 = vand.u32 2147483647, %v743
        %vm939 = vcmp.eq.f32.partialorder %v938, 8.507059e+37
        %v940 = vand.u32 %v743, 2147483648
        %v941 = vor.u32 1.1754944e-38, %v940
        %v942 = vsel %vm939, %v941, %v937
        %v943 = vmul.f32 1.0, %v942
        %v944 = vrcp.pop %v744
        %v945 = vmul.f32 %v744, %v944
        %v946 = vsub.f32 1.0, %v945
        %v947 = vmul.f32 %v944, %v946
        %v948 = vadd.f32 %v944, %v947
        %vm949 = vweird.f32 %v744
        %vm950 = vweird.f32 %v944
        %vm951 = vmor %vm949, %vm950
        %v952 = vsel %vm951, %v944, %v948
        %v953 = vand.u32 2147483647, %v744
        %vm954 = vcmp.eq.f32.partialorder %v953, 8.507059e+37
        %v955 = vand.u32 %v744, 2147483648
        %v956 = vor.u32 1.1754944e-38, %v955
        %v957 = vsel %vm954, %v956, %v952
        %v958 = vmul.f32 1.0, %v957
        %v959 = vrcp.pop %v745
        %v960 = vmul.f32 %v745, %v959
        %v961 = vsub.f32 1.0, %v960
        %v962 = vmul.f32 %v959, %v961
        %v963 = vadd.f32 %v959, %v962
        %vm964 = vweird.f32 %v745
        %vm965 = vweird.f32 %v959
        %vm966 = vmor %vm964, %vm965
        %v967 = vsel %vm966, %v959, %v963
        %v968 = vand.u32 2147483647, %v745
        %vm969 = vcmp.eq.f32.partialorder %v968, 8.507059e+37
        %v970 = vand.u32 %v745, 2147483648
        %v971 = vor.u32 1.1754944e-38, %v970
        %v972 = vsel %vm969, %v971, %v967
        %v973 = vmul.f32 1.0, %v972
        %v974 = vrcp.pop %v746
        %v975 = vmul.f32 %v746, %v974
        %v976 = vsub.f32 1.0, %v975
        %v977 = vmul.f32 %v974, %v976
        %v978 = vadd.f32 %v974, %v977
        %vm979 = vweird.f32 %v746
        %vm980 = vweird.f32 %v974
        %vm981 = vmor %vm979, %vm980
        %v982 = vsel %vm981, %v974, %v978
        %v983 = vand.u32 2147483647, %v746
        %vm984 = vcmp.eq.f32.partialorder %v983, 8.507059e+37
        %v985 = vand.u32 %v746, 2147483648
        %v986 = vor.u32 1.1754944e-38, %v985
        %v987 = vsel %vm984, %v986, %v982
        %v988 = vmul.f32 1.0, %v987
        %v989 = vrcp.pop %v747
        %v990 = vmul.f32 %v747, %v989
        %v991 = vsub.f32 1.0, %v990
        %v992 = vmul.f32 %v989, %v991
        %v993 = vadd.f32 %v989, %v992
        %vm994 = vweird.f32 %v747
        %vm995 = vweird.f32 %v989
        %vm996 = vmor %vm994, %vm995
        %v997 = vsel %vm996, %v989, %v993
        %v998 = vand.u32 2147483647, %v747
        %vm999 = vcmp.eq.f32.partialorder %v998, 8.507059e+37
        %v1000 = vand.u32 %v747, 2147483648
        %v1001 = vor.u32 1.1754944e-38, %v1000
        %v1002 = vsel %vm999, %v1001, %v997
        %v1003 = vmul.f32 1.0, %v1002
        %v1004 = vrcp.pop %v748
        %v1005 = vmul.f32 %v748, %v1004
        %v1006 = vsub.f32 1.0, %v1005
        %v1007 = vmul.f32 %v1004, %v1006
        %v1008 = vadd.f32 %v1004, %v1007
        %vm1009 = vweird.f32 %v748
        %vm1010 = vweird.f32 %v1004
        %vm1011 = vmor %vm1009, %vm1010
        %v1012 = vsel %vm1011, %v1004, %v1008
        %v1013 = vand.u32 2147483647, %v748
        %vm1014 = vcmp.eq.f32.partialorder %v1013, 8.507059e+37
        %v1015 = vand.u32 %v748, 2147483648
        %v1016 = vor.u32 1.1754944e-38, %v1015
        %v1017 = vsel %vm1014, %v1016, %v1012
        %v1018 = vmul.f32 1.0, %v1017
        %v1019 = vrcp.pop %v749
        %v1020 = vmul.f32 %v749, %v1019
        %v1021 = vsub.f32 1.0, %v1020
        %v1022 = vmul.f32 %v1019, %v1021
        %v1023 = vadd.f32 %v1019, %v1022
        %vm1024 = vweird.f32 %v749
        %vm1025 = vweird.f32 %v1019
        %vm1026 = vmor %vm1024, %vm1025
        %v1027 = vsel %vm1026, %v1019, %v1023
        %v1028 = vand.u32 2147483647, %v749
        %vm1029 = vcmp.eq.f32.partialorder %v1028, 8.507059e+37
        %v1030 = vand.u32 %v749, 2147483648
        %v1031 = vor.u32 1.1754944e-38, %v1030
        %v1032 = vsel %vm1029, %v1031, %v1027
        %v1033 = vmul.f32 1.0, %v1032
        %v1034 = vrcp.pop %v750
        %v1035 = vmul.f32 %v750, %v1034
        %v1036 = vsub.f32 1.0, %v1035
        %v1037 = vmul.f32 %v1034, %v1036
        %v1038 = vadd.f32 %v1034, %v1037
        %vm1039 = vweird.f32 %v750
        %vm1040 = vweird.f32 %v1034
        %vm1041 = vmor %vm1039, %vm1040
        %v1042 = vsel %vm1041, %v1034, %v1038
        %v1043 = vand.u32 2147483647, %v750
        %vm1044 = vcmp.eq.f32.partialorder %v1043, 8.507059e+37
        %v1045 = vand.u32 %v750, 2147483648
        %v1046 = vor.u32 1.1754944e-38, %v1045
        %v1047 = vsel %vm1044, %v1046, %v1042
        %v1048 = vmul.f32 1.0, %v1047
        %v1049 = vrcp.pop %v751
        %v1050 = vmul.f32 %v751, %v1049
        %v1051 = vsub.f32 1.0, %v1050
        %v1052 = vmul.f32 %v1049, %v1051
        %v1053 = vadd.f32 %v1049, %v1052
        %vm1054 = vweird.f32 %v751
        %vm1055 = vweird.f32 %v1049
        %vm1056 = vmor %vm1054, %vm1055
        %v1057 = vsel %vm1056, %v1049, %v1053
        %v1058 = vand.u32 2147483647, %v751
        %vm1059 = vcmp.eq.f32.partialorder %v1058, 8.507059e+37
        %v1060 = vand.u32 %v751, 2147483648
        %v1061 = vor.u32 1.1754944e-38, %v1060
        %v1062 = vsel %vm1059, %v1061, %v1057
        %v1063 = vmul.f32 1.0, %v1062
        %v1064 = vrcp.pop %v752
        %v1065 = vmul.f32 %v752, %v1064
        %v1066 = vsub.f32 1.0, %v1065
        %v1067 = vmul.f32 %v1064, %v1066
        %v1068 = vadd.f32 %v1064, %v1067
        %vm1069 = vweird.f32 %v752
        %vm1070 = vweird.f32 %v1064
        %vm1071 = vmor %vm1069, %vm1070
        %v1072 = vsel %vm1071, %v1064, %v1068
        %v1073 = vand.u32 2147483647, %v752
        %vm1074 = vcmp.eq.f32.partialorder %v1073, 8.507059e+37
        %v1075 = vand.u32 %v752, 2147483648
        %v1076 = vor.u32 1.1754944e-38, %v1075
        %v1077 = vsel %vm1074, %v1076, %v1072
        %v1078 = vmul.f32 1.0, %v1077
        %v1079 = vrcp.pop %v753
        %v1080 = vmul.f32 %v753, %v1079
        %v1081 = vsub.f32 1.0, %v1080
        %v1082 = vmul.f32 %v1079, %v1081
        %v1083 = vadd.f32 %v1079, %v1082
        %vm1084 = vweird.f32 %v753
        %vm1085 = vweird.f32 %v1079
        %vm1086 = vmor %vm1084, %vm1085
        %v1087 = vsel %vm1086, %v1079, %v1083
        %v1088 = vand.u32 2147483647, %v753
        %vm1089 = vcmp.eq.f32.partialorder %v1088, 8.507059e+37
        %v1090 = vand.u32 %v753, 2147483648
        %v1091 = vor.u32 1.1754944e-38, %v1090
        %v1092 = vsel %vm1089, %v1091, %v1087
        %v1093 = vmul.f32 1.0, %v1092
        %v1094 = vrcp.pop %v754
        %v1095 = vmul.f32 %v754, %v1094
        %v1096 = vsub.f32 1.0, %v1095
        %v1097 = vmul.f32 %v1094, %v1096
        %v1098 = vadd.f32 %v1094, %v1097
        %vm1099 = vweird.f32 %v754
        %vm1100 = vweird.f32 %v1094
        %vm1101 = vmor %vm1099, %vm1100
        %v1102 = vsel %vm1101, %v1094, %v1098
        %v1103 = vand.u32 2147483647, %v754
        %vm1104 = vcmp.eq.f32.partialorder %v1103, 8.507059e+37
        %v1105 = vand.u32 %v754, 2147483648
        %v1106 = vor.u32 1.1754944e-38, %v1105
        %v1107 = vsel %vm1104, %v1106, %v1102
        %v1108 = vmul.f32 1.0, %v1107
        %v1109 = vrcp.pop %v755
        %v1110 = vmul.f32 %v755, %v1109
        %v1111 = vsub.f32 1.0, %v1110
        %v1112 = vmul.f32 %v1109, %v1111
        %v1113 = vadd.f32 %v1109, %v1112
        %vm1114 = vweird.f32 %v755
        %vm1115 = vweird.f32 %v1109
        %vm1116 = vmor %vm1114, %vm1115
        %v1117 = vsel %vm1116, %v1109, %v1113
        %v1118 = vand.u32 2147483647, %v755
        %vm1119 = vcmp.eq.f32.partialorder %v1118, 8.507059e+37
        %v1120 = vand.u32 %v755, 2147483648
        %v1121 = vor.u32 1.1754944e-38, %v1120
        %v1122 = vsel %vm1119, %v1121, %v1117
        %v1123 = vmul.f32 1.0, %v1122
        %v1124 = vrcp.pop %v756
        %v1125 = vmul.f32 %v756, %v1124
        %v1126 = vsub.f32 1.0, %v1125
        %v1127 = vmul.f32 %v1124, %v1126
        %v1128 = vadd.f32 %v1124, %v1127
        %vm1129 = vweird.f32 %v756
        %vm1130 = vweird.f32 %v1124
        %vm1131 = vmor %vm1129, %vm1130
        %v1132 = vsel %vm1131, %v1124, %v1128
        %v1133 = vand.u32 2147483647, %v756
        %vm1134 = vcmp.eq.f32.partialorder %v1133, 8.507059e+37
        %v1135 = vand.u32 %v756, 2147483648
        %v1136 = vor.u32 1.1754944e-38, %v1135
        %v1137 = vsel %vm1134, %v1136, %v1132
        %v1138 = vmul.f32 1.0, %v1137
        %v1139 = vrcp.pop %v757
        %v1140 = vmul.f32 %v757, %v1139
        %v1141 = vsub.f32 1.0, %v1140
        %v1142 = vmul.f32 %v1139, %v1141
        %v1143 = vadd.f32 %v1139, %v1142
        %vm1144 = vweird.f32 %v757
        %vm1145 = vweird.f32 %v1139
        %vm1146 = vmor %vm1144, %vm1145
        %v1147 = vsel %vm1146, %v1139, %v1143
        %v1148 = vand.u32 2147483647, %v757
        %vm1149 = vcmp.eq.f32.partialorder %v1148, 8.507059e+37
        %v1150 = vand.u32 %v757, 2147483648
        %v1151 = vor.u32 1.1754944e-38, %v1150
        %v1152 = vsel %vm1149, %v1151, %v1147
        %v1153 = vmul.f32 1.0, %v1152
        %v1154 = vrcp.pop %v758
        %v1155 = vmul.f32 %v758, %v1154
        %v1156 = vsub.f32 1.0, %v1155
        %v1157 = vmul.f32 %v1154, %v1156
        %v1158 = vadd.f32 %v1154, %v1157
        %vm1159 = vweird.f32 %v758
        %vm1160 = vweird.f32 %v1154
        %vm1161 = vmor %vm1159, %vm1160
        %v1162 = vsel %vm1161, %v1154, %v1158
        %v1163 = vand.u32 2147483647, %v758
        %vm1164 = vcmp.eq.f32.partialorder %v1163, 8.507059e+37
        %v1165 = vand.u32 %v758, 2147483648
        %v1166 = vor.u32 1.1754944e-38, %v1165
        %v1167 = vsel %vm1164, %v1166, %v1162
        %v1168 = vmul.f32 1.0, %v1167
        %v1169 = vrcp.pop %v759
        %v1170 = vmul.f32 %v759, %v1169
        %v1171 = vsub.f32 1.0, %v1170
        %v1172 = vmul.f32 %v1169, %v1171
        %v1173 = vadd.f32 %v1169, %v1172
        %vm1174 = vweird.f32 %v759
        %vm1175 = vweird.f32 %v1169
        %vm1176 = vmor %vm1174, %vm1175
        %v1177 = vsel %vm1176, %v1169, %v1173
        %v1178 = vand.u32 2147483647, %v759
        %vm1179 = vcmp.eq.f32.partialorder %v1178, 8.507059e+37
        %v1180 = vand.u32 %v759, 2147483648
        %v1181 = vor.u32 1.1754944e-38, %v1180
        %v1182 = vsel %vm1179, %v1181, %v1177
        %v1183 = vmul.f32 1.0, %v1182
        %v1184 = vrcp.pop %v760
        %v1185 = vmul.f32 %v760, %v1184
        %v1186 = vsub.f32 1.0, %v1185
        %v1187 = vmul.f32 %v1184, %v1186
        %v1188 = vadd.f32 %v1184, %v1187
        %vm1189 = vweird.f32 %v760
        %vm1190 = vweird.f32 %v1184
        %vm1191 = vmor %vm1189, %vm1190
        %v1192 = vsel %vm1191, %v1184, %v1188
        %v1193 = vand.u32 2147483647, %v760
        %vm1194 = vcmp.eq.f32.partialorder %v1193, 8.507059e+37
        %v1195 = vand.u32 %v760, 2147483648
        %v1196 = vor.u32 1.1754944e-38, %v1195
        %v1197 = vsel %vm1194, %v1196, %v1192
        %v1198 = vmul.f32 1.0, %v1197
        %v1199 = vrcp.pop %v761
        %v1200 = vmul.f32 %v761, %v1199
        %v1201 = vsub.f32 1.0, %v1200
        %v1202 = vmul.f32 %v1199, %v1201
        %v1203 = vadd.f32 %v1199, %v1202
        %vm1204 = vweird.f32 %v761
        %vm1205 = vweird.f32 %v1199
        %vm1206 = vmor %vm1204, %vm1205
        %v1207 = vsel %vm1206, %v1199, %v1203
        %v1208 = vand.u32 2147483647, %v761
        %vm1209 = vcmp.eq.f32.partialorder %v1208, 8.507059e+37
        %v1210 = vand.u32 %v761, 2147483648
        %v1211 = vor.u32 1.1754944e-38, %v1210
        %v1212 = vsel %vm1209, %v1211, %v1207
        %v1213 = vmul.f32 1.0, %v1212
        %v1214 = vrcp.pop %v762
        %v1215 = vmul.f32 %v762, %v1214
        %v1216 = vsub.f32 1.0, %v1215
        %v1217 = vmul.f32 %v1214, %v1216
        %v1218 = vadd.f32 %v1214, %v1217
        %vm1219 = vweird.f32 %v762
        %vm1220 = vweird.f32 %v1214
        %vm1221 = vmor %vm1219, %vm1220
        %v1222 = vsel %vm1221, %v1214, %v1218
        %v1223 = vand.u32 2147483647, %v762
        %vm1224 = vcmp.eq.f32.partialorder %v1223, 8.507059e+37
        %v1225 = vand.u32 %v762, 2147483648
        %v1226 = vor.u32 1.1754944e-38, %v1225
        %v1227 = vsel %vm1224, %v1226, %v1222
        %v1228 = vmul.f32 1.0, %v1227
        %v1229 = vrcp.pop %v763
        %v1230 = vmul.f32 %v763, %v1229
        %v1231 = vsub.f32 1.0, %v1230
        %v1232 = vmul.f32 %v1229, %v1231
        %v1233 = vadd.f32 %v1229, %v1232
        %vm1234 = vweird.f32 %v763
        %vm1235 = vweird.f32 %v1229
        %vm1236 = vmor %vm1234, %vm1235
        %v1237 = vsel %vm1236, %v1229, %v1233
        %v1238 = vand.u32 2147483647, %v763
        %vm1239 = vcmp.eq.f32.partialorder %v1238, 8.507059e+37
        %v1240 = vand.u32 %v763, 2147483648
        %v1241 = vor.u32 1.1754944e-38, %v1240
        %v1242 = vsel %vm1239, %v1241, %v1237
        %v1243 = vmul.f32 1.0, %v1242
        %v1244 = vsub.f32 %v470, %v265
        %v1245 = vsub.f32 %v471, %v266
        %v1246 = vsub.f32 %v472, %v267
        %v1247 = vsub.f32 %v473, %v268
        %v1248 = vsub.f32 %v474, %v269
        %v1249 = vsub.f32 %v475, %v270
        %v1250 = vsub.f32 %v476, %v271
        %v1251 = vsub.f32 %v477, %v272
        %v1252 = vsub.f32 %v478, %v273
        %v1253 = vsub.f32 %v479, %v274
        %v1254 = vsub.f32 %v480, %v275
        %v1255 = vsub.f32 %v481, %v276
        %v1256 = vsub.f32 %v482, %v277
        %v1257 = vsub.f32 %v483, %v278
        %v1258 = vsub.f32 %v484, %v279
        %v1259 = vsub.f32 %v485, %v280
        %v1260 = vsub.f32 %v486, %v281
        %v1261 = vsub.f32 %v487, %v282
        %v1262 = vsub.f32 %v488, %v283
        %v1263 = vsub.f32 %v489, %v284
        %v1264 = vsub.f32 %v490, %v285
        %v1265 = vsub.f32 %v491, %v286
        %v1266 = vsub.f32 %v492, %v287
        %v1267 = vsub.f32 %v493, %v288
        %v1268 = vsub.f32 %v494, %v289
        %v1269 = vsub.f32 %v495, %v290
        %v1270 = vsub.f32 %v496, %v291
        %v1271 = vsub.f32 %v497, %v292
        %v1272 = vsub.f32 %v498, %v293
        %v1273 = vsub.f32 %v499, %v294
        %v1274 = vsub.f32 %v500, %v295
        %v1275 = vsub.f32 %v501, %v296
        %v1276 = vmul.f32 %v778, %v1244
        %v1277 = vmul.f32 %v793, %v1245
        %v1278 = vmul.f32 %v808, %v1246
        %v1279 = vmul.f32 %v823, %v1247
        %v1280 = vmul.f32 %v838, %v1248
        %v1281 = vmul.f32 %v853, %v1249
        %v1282 = vmul.f32 %v868, %v1250
        %v1283 = vmul.f32 %v883, %v1251
        %v1284 = vmul.f32 %v898, %v1252
        %v1285 = vmul.f32 %v913, %v1253
        %v1286 = vmul.f32 %v928, %v1254
        %v1287 = vmul.f32 %v943, %v1255
        %v1288 = vmul.f32 %v958, %v1256
        %v1289 = vmul.f32 %v973, %v1257
        %v1290 = vmul.f32 %v988, %v1258
        %v1291 = vmul.f32 %v1003, %v1259
        %v1292 = vmul.f32 %v1018, %v1260
        %v1293 = vmul.f32 %v1033, %v1261
        %v1294 = vmul.f32 %v1048, %v1262
        %v1295 = vmul.f32 %v1063, %v1263
        %v1296 = vmul.f32 %v1078, %v1264
        %v1297 = vmul.f32 %v1093, %v1265
        %v1298 = vmul.f32 %v1108, %v1266
        %v1299 = vmul.f32 %v1123, %v1267
        %v1300 = vmul.f32 %v1138, %v1268
        %v1301 = vmul.f32 %v1153, %v1269
        %v1302 = vmul.f32 %v1168, %v1270
        %v1303 = vmul.f32 %v1183, %v1271
        %v1304 = vmul.f32 %v1198, %v1272
        %v1305 = vmul.f32 %v1213, %v1273
        %v1306 = vmul.f32 %v1228, %v1274
        %v1307 = vmul.f32 %v1243, %v1275
        %v1308 = vadd.f32 %v265, %v1276
        %v1309 = vadd.f32 %v266, %v1277
        %v1310 = vadd.f32 %v267, %v1278
        %v1311 = vadd.f32 %v268, %v1279
        %v1312 = vadd.f32 %v269, %v1280
        %v1313 = vadd.f32 %v270, %v1281
        %v1314 = vadd.f32 %v271, %v1282
        %v1315 = vadd.f32 %v272, %v1283
        %v1316 = vadd.f32 %v273, %v1284
        %v1317 = vadd.f32 %v274, %v1285
        %v1318 = vadd.f32 %v275, %v1286
        %v1319 = vadd.f32 %v276, %v1287
        %v1320 = vadd.f32 %v277, %v1288
        %v1321 = vadd.f32 %v278, %v1289
        %v1322 = vadd.f32 %v279, %v1290
        %v1323 = vadd.f32 %v280, %v1291
        %v1324 = vadd.f32 %v281, %v1292
        %v1325 = vadd.f32 %v282, %v1293
        %v1326 = vadd.f32 %v283, %v1294
        %v1327 = vadd.f32 %v284, %v1295
        %v1328 = vadd.f32 %v285, %v1296
        %v1329 = vadd.f32 %v286, %v1297
        %v1330 = vadd.f32 %v287, %v1298
        %v1331 = vadd.f32 %v288, %v1299
        %v1332 = vadd.f32 %v289, %v1300
        %v1333 = vadd.f32 %v290, %v1301
        %v1334 = vadd.f32 %v291, %v1302
        %v1335 = vadd.f32 %v292, %v1303
        %v1336 = vadd.f32 %v293, %v1304
        %v1337 = vadd.f32 %v294, %v1305
        %v1338 = vadd.f32 %v295, %v1306
        %v1339 = vadd.f32 %v296, %v1307
        %1340 = vst [vmem:[%s262] sm:$0xff] %v1308
        %1341 = vst [vmem:[%s262 + $0x8] sm:$0xff] %v1309
        %1342 = vst [vmem:[%s262 + $0x10] sm:$0xff] %v1310
        %1343 = vst [vmem:[%s262 + $0x18] sm:$0xff] %v1311
        %1344 = vst [vmem:[%s262 + $0x20] sm:$0xff] %v1312
        %1345 = vst [vmem:[%s262 + $0x28] sm:$0xff] %v1313
        %1346 = vst [vmem:[%s262 + $0x30] sm:$0xff] %v1314
        %1347 = vst [vmem:[%s262 + $0x38] sm:$0xff] %v1315
        %1348 = vst [vmem:[%s262 + $0x40] sm:$0xff] %v1316
        %1349 = vst [vmem:[%s262 + $0x48] sm:$0xff] %v1317
        %1350 = vst [vmem:[%s262 + $0x50] sm:$0xff] %v1318
        %1351 = vst [vmem:[%s262 + $0x58] sm:$0xff] %v1319
        %1352 = vst [vmem:[%s262 + $0x60] sm:$0xff] %v1320
        %1353 = vst [vmem:[%s262 + $0x68] sm:$0xff] %v1321
        %1354 = vst [vmem:[%s262 + $0x70] sm:$0xff] %v1322
        %1355 = vst [vmem:[%s262 + $0x78] sm:$0xff] %v1323
        %1356 = vst [vmem:[%s262 + $0x80] sm:$0xff] %v1324
        %1357 = vst [vmem:[%s262 + $0x88] sm:$0xff] %v1325
        %1358 = vst [vmem:[%s262 + $0x90] sm:$0xff] %v1326
        %1359 = vst [vmem:[%s262 + $0x98] sm:$0xff] %v1327
        %1360 = vst [vmem:[%s262 + $0xa0] sm:$0xff] %v1328
        %1361 = vst [vmem:[%s262 + $0xa8] sm:$0xff] %v1329
        %1362 = vst [vmem:[%s262 + $0xb0] sm:$0xff] %v1330
        %1363 = vst [vmem:[%s262 + $0xb8] sm:$0xff] %v1331
        %1364 = vst [vmem:[%s262 + $0xc0] sm:$0xff] %v1332
        %1365 = vst [vmem:[%s262 + $0xc8] sm:$0xff] %v1333
        %1366 = vst [vmem:[%s262 + $0xd0] sm:$0xff] %v1334
        %1367 = vst [vmem:[%s262 + $0xd8] sm:$0xff] %v1335
        %1368 = vst [vmem:[%s262 + $0xe0] sm:$0xff] %v1336
        %1369 = vst [vmem:[%s262 + $0xe8] sm:$0xff] %v1337
        %1370 = vst [vmem:[%s262 + $0xf0] sm:$0xff] %v1338
        %1371 = vst [vmem:[%s262 + $0xf8] sm:$0xff] %v1339
        %s1372 = sand.u32 %s142, 1
        %s1373 = scalar_lea.sflag [#allocation5], %s1372
        %s1374 = sand.u32 %s142, 1
        %s1375 = smul.addr %s1374, 256
        %s1376 = scalar_lea.vmem [#allocation8], %s1375
        // Predicated region
        $region49: #{tpu_custom_call.1} parent=39 // pred_check
          %p1377 = pneg %p152
        $region50: #{tpu_custom_call.1} parent=39 // pred_check_branch
          %1379 = sbr.rel (%p1377) target = $region52
        $region51: #{tpu_custom_call.1} parent=39 // pred_region
          %s1380 = smul.u32 32, %s24
          %1382 = vsyncadd %s1373, 0
          %s1383 = smul.addr %s1380, 8
          %s1384 = scalar_lea.hbm %s5, %s1383
          %s1385 = sshll.u32 %s1376, 4
          %s1386 = int_to_ptr.vmem [resolvable:$true] %s1385
          %s1387 = sshll.u32 %s1384, 4
          %s1388 = int_to_ptr.hbm [resolvable:$true] %s1387
          %1393 = dma.vmem_to_hbm [thread:$0]  %s1386, 4096, %s1388, %s1373, 128, 128, 8
        $region52: #{tpu_custom_call.1} parent=39 // pred_fallthru
          _
      $region40: #{tpu_custom_call.1} parent=5 // pred_fallthru
        _
      %p1394 = scmp.le.s32.totalorder 2, %s19
      // Predicated region
      $region53: #{tpu_custom_call.1} parent=5 // pred_check
        %p1395 = pneg %p1394
      $region54: #{tpu_custom_call.1} parent=5 // pred_check_branch
        %1397 = sbr.rel (%p1395) target = $region56
      $region55: #{tpu_custom_call.1} parent=5 // pred_region
        %s1398 = ssub.s32 %s19, 2
        // Predicated region
        $region57: #{tpu_custom_call.1} parent=55 // pred_check
          %p1399 = pneg %p158
        $region58: #{tpu_custom_call.1} parent=55 // pred_check_branch
          %1401 = sbr.rel (%p1399) target = $region60
        $region59: #{tpu_custom_call.1} parent=55 // pred_region
          %s1402 = sand.u32 %s143, 1
          %s1403 = scalar_lea.sflag [#allocation5], %s1402
          %s1404 = sand.u32 %s143, 1
          %s1405 = smul.addr %s1404, 256
          %s1406 = scalar_lea.vmem [#allocation8], %s1405
          %1408 = dma.done %s1403, 4096
        $region60: #{tpu_custom_call.1} parent=55 // pred_fallthru
          _
      $region56: #{tpu_custom_call.1} parent=5 // pred_fallthru
        _
    $region6: #{tpu_custom_call.1} parent=1 // loop_footer
      %s23 = sadd.s32 1, %s19
    $region7: #{tpu_custom_call.1} parent=1 // loop_footer_branch
      %18 = sbr.rel target = $region3
    $region8: #{tpu_custom_call.1} parent=1 // loop_exit
      _
    %1409 = vsyncpa [#allocation4], 1
    %s1410 = scalar_lea.sflag [#allocation4], 1
    %1411 = vsyncpa %s1410, 1
    %1412 = vsyncpa [#allocation7], 1
    %1413 = vsyncpa [#allocation5], 1
    %s1414 = scalar_lea.sflag [#allocation5], 1
    %1415 = vsyncpa %s1414, 1

</llo_original>
